<compile_context>
chip_gen: v7x
topology: tpu7x:2x2x1
jax: 0.10.0
libtpu: 0.0.40
codegen_flags: <defaults>
</compile_context>

<pallas_src>
import functools

import jax
import jax.numpy as jnp
from jax.experimental import pallas as pl
from jax.experimental.pallas import tpu as pltpu


def _lr_pad_kernel(x_ref, o_ref, *, padding, use_roll):
    """One row tile: o = [x[:, -p:], x, x[:, :p]] along the lane (width) axis."""
    w = x_ref.shape[-1]
    x = x_ref[...]
    if use_roll:
        # roll(x, p)[:, :w] are the first w output columns and
        # roll(x, p)[:, :2p] are the last 2p -- exactly the circular pad.
        # The wide store starts at lane 0 and is unmasked (w % 128 == 0);
        # only the 2p-lane tail store is masked.  The roll runs on the XLU.
        r = pltpu.roll(x, padding, axis=1)
        o_ref[:, :w] = r
        o_ref[:, w:] = r[:, :2 * padding]
    else:
        # Fallback (W not lane-aligned, or padding > W/2): three direct stores.
        o_ref[:, padding:padding + w] = x          # center copy
        o_ref[:, :padding] = x[:, w - padding:]    # left edge  <- right-most cols
        o_ref[:, padding + w:] = x[:, :padding]    # right edge <- left-most cols


def _choose_tm(m, w, w_out, itemsize):
    """Row-tile size: sublane-pack aligned, VMEM-safe (v7x), core-friendly."""
    pack = 8 * max(1, 4 // itemsize)        # 8 rows f32 / 16 bf16 / 32 int8
    # Double-buffered (input + output) footprint per step kept under ~40 MiB:
    # comfortably inside v7x's 64 MiB VMEM, trivially inside v5e/v6e's 128 MiB.
    budget = 40 * 1024 * 1024
    per_row = 2 * (w + w_out) * itemsize
    max_tm = min(2048, max(pack, (budget // per_row) // pack * pack))
    if m <= pack:
        return m
    if m <= 2 * max_tm:
        # Split into (at least) two grid steps so both v7x TensorCores get work.
        tm = pl.cdiv(pl.cdiv(m, 2), pack) * pack
        return min(tm, max_tm)
    # Large input: pick the pack-aligned candidate that minimizes masked rows
    # in the final partial block; prefer larger tiles on ties.
    candidates = sorted({t for t in (512, 1024, 2048, max_tm) if pack <= t <= max_tm})
    return min(candidates, key=lambda t: ((-m) % t, -t))


def lr_pad(x, padding=1):
    """Circular pad of the last (width) dim of an NCHW tensor, via Pallas."""
    if padding <= 0:
        return x
    *lead, w = x.shape
    assert padding <= w, "padding must not exceed width"
    m = 1
    for d in lead:
        m *= d
    w_out = w + 2 * padding
    itemsize = jnp.dtype(x.dtype).itemsize

    x2 = x.reshape(m, w)                    # free reshape (contiguous)
    tm = _choose_tm(m, w, w_out, itemsize)
    use_roll = (w % 128 == 0) and (2 * padding <= w)

    out = pl.pallas_call(
        functools.partial(_lr_pad_kernel, padding=padding, use_roll=use_roll),
        out_shape=jax.ShapeDtypeStruct((m, w_out), x.dtype),
        grid=(pl.cdiv(m, tm),),
        in_specs=[pl.BlockSpec((tm, w), lambda i: (i, 0))],
        out_specs=pl.BlockSpec((tm, w_out), lambda i: (i, 0)),
        compiler_params=pltpu.CompilerParams(
            dimension_semantics=(pltpu.PARALLEL,),
            vmem_limit_bytes=48 * 1024 * 1024,
        ),
        cost_estimate=pl.CostEstimate(
            flops=0,
            transcendentals=0,
            bytes_accessed=m * (w + w_out) * itemsize,
        ),
    )(x2)
    return out.reshape(*lead, w_out)


def _reference_lr_pad(x, padding=1):
    # Pure-JAX reference mirroring the PyTorch module.
    return jnp.concatenate([x[..., -padding:], x, x[..., :padding]], axis=-1)


if __name__ == "__main__":
    key = jax.random.PRNGKey(0)
    k1, k2, k3 = jax.random.split(key, 3)

    # Main small test shape (NCHW), padding=1 like the module default.
    # M=128 -> tm=64, 2 grid steps; W=16 exercises the non-roll fallback path.
    x = jax.random.normal(k1, (2, 4, 16, 16), jnp.float32)
    y = jax.block_until_ready(lr_pad(x, padding=1))
    ref = _reference_lr_pad(x, padding=1)
    assert y.shape == ref.shape
    assert bool(jnp.all(y == ref))

    # Lane-aligned width (W=128) with padding > 1: exercises the roll-based
    # lane-dense store path, multi-step grid, partial tail block.
    x2 = jax.random.normal(k2, (2, 16, 24, 128), jnp.float32)  # M = 768
    y2 = jax.block_until_ready(lr_pad(x2, padding=3))
    ref2 = _reference_lr_pad(x2, padding=3)
    assert y2.shape == ref2.shape
    assert bool(jnp.all(y2 == ref2))

    # bfloat16: exercises the dtype-aware sublane pack (16) and packed roll.
    x3 = jax.random.normal(k3, (1, 4, 8, 128), jnp.bfloat16)  # M = 32
    y3 = jax.block_until_ready(lr_pad(x3, padding=1))
    ref3 = _reference_lr_pad(x3, padding=1)
    assert y3.shape == ref3.shape
    assert bool(jnp.all(y3 == ref3))

    print("KERNEL_OK")
</pallas_src>

<mosaic_0001>
module attributes {stable_mosaic.version = 11 : i64} {
  func.func @_lr_pad_kernel(%arg0: i32, %arg1: memref<64x16xf32, #tpu.memory_space<vmem>>, %arg2: memref<64x18xf32, #tpu.memory_space<vmem>>) attributes {dimension_semantics = [#tpu.dimension_semantics<parallel>], iteration_bounds = array<i64: 2>, scalar_prefetch = 0 : i64, scratch_operands = 0 : i64, tpu.core_type = #tpu.core_type<tc>, window_params = [{transform_indices = @transform_0, window_bounds = array<i64: 64, 16>}, {transform_indices = @transform_1, window_bounds = array<i64: 64, 18>}]} {
    %c0 = arith.constant 0 : index
    %c0_0 = arith.constant 0 : index
    %0 = vector.load %arg1[%c0, %c0_0] : memref<64x16xf32, #tpu.memory_space<vmem>>, vector<64x16xf32>
    %c0_1 = arith.constant 0 : index
    %c1 = arith.constant 1 : index
    %1 = vector.load %arg2[%c0_1, %c1] : memref<64x18xf32, #tpu.memory_space<vmem>>, vector<64x16xf32>
    tpu.vector_store %arg2[%c0_1, %c1], %0 {strides = array<i32>} : memref<64x18xf32, #tpu.memory_space<vmem>>, vector<64x16xf32>,
    %2 = vector.extract_strided_slice %0 {offsets = [0, 15], sizes = [64, 1], strides = [1, 1]} : vector<64x16xf32> to vector<64x1xf32>
    %c0_2 = arith.constant 0 : index
    %c0_3 = arith.constant 0 : index
    %3 = vector.load %arg2[%c0_2, %c0_3] : memref<64x18xf32, #tpu.memory_space<vmem>>, vector<64x1xf32>
    tpu.vector_store %arg2[%c0_2, %c0_3], %2 {strides = array<i32>} : memref<64x18xf32, #tpu.memory_space<vmem>>, vector<64x1xf32>,
    %4 = vector.extract_strided_slice %0 {offsets = [0, 0], sizes = [64, 1], strides = [1, 1]} : vector<64x16xf32> to vector<64x1xf32>
    %c0_4 = arith.constant 0 : index
    %c17 = arith.constant 17 : index
    %5 = vector.load %arg2[%c0_4, %c17] : memref<64x18xf32, #tpu.memory_space<vmem>>, vector<64x1xf32>
    tpu.vector_store %arg2[%c0_4, %c17], %4 {strides = array<i32>} : memref<64x18xf32, #tpu.memory_space<vmem>>, vector<64x1xf32>,
    return
  }
  func.func @transform_0(%arg0: i32) -> (i32, i32) {
    %c0_i32 = arith.constant 0 : i32
    %c0_i32_0 = arith.constant 0 : i32
    return %arg0, %c0_i32 : i32, i32
  }
  func.func @transform_1(%arg0: i32) -> (i32, i32) {
    %c0_i32 = arith.constant 0 : i32
    %c0_i32_0 = arith.constant 0 : i32
    return %arg0, %c0_i32 : i32, i32
  }
}

</mosaic_0001>

<llo_original>
// kernel: tpu_custom_call.1
$region0: #{tpu_custom_call.1}
  #allocation0 [shape = 'u32[]', space=smem, size = 0x4, offset = 0x4, fixed_abs, tag = 'smem constant byte address 0x4 - core index']
  #allocation1 [shape = 'u32[144,128]{1,0:T(1,128)}', space=vmem, size = 0x12000, scoped, tag = 'internal scratch']
  %s0 = inlined_call_operand.vmem [shape: f32[128,16], index: 0, kind: input, shape index: {}]
  %s1 = inlined_call_operand.vmem [shape: f32[128,18], index: 1, kind: output, shape index: {}]
  %s2 = sld [smem:[#allocation0]]
  $region37: #{tpu_custom_call.1} parent=0
    _
  %s4 = ssub.s32 1, %s2
  %s5 = scalar_select 0, %s4, %s2
  loop: start=0, step=1, limit=4
  $region2: #{tpu_custom_call.1} parent=0 // loop_pre_header
    _
  $region3: #{tpu_custom_call.1} parent=0 // loop_header
    %s7 = sphi 0, %s11
    %p8 = scmp.ge.s32.totalorder %s7, 4
    %s17 = sphi 0, %s19
    %s20 = sphi 0, %s17
    %s21 = sphi 0, %s20
    %s37 = sphi 0, %s21
    %s43 = sphi 0, %s45
    %s46 = sphi 0, %s43
    %s47 = sphi 0, %s46
    %s63 = sphi 0, %s47
  $region4: #{tpu_custom_call.1} parent=0 // loop_header_branch
    %10 = sbr.rel (%p8) target = $region8
  $region5: #{tpu_custom_call.1} parent=0 // loop_body
    %s12 = ssub.s32 %s7, 1
    %s13 = ssub.s32 %s7, 2
    %s14 = sadd.s32 %s7, 1
    %s15 = ssub.s32 %s7, %s14
    %p16 = scmp.eq.s32.totalorder %s15, 0
    %s18 = sadd.s32 %s17, 1
    %s19 = scalar_select %p16, %s17, %s18
    %p22 = pneg %p16
    %p23 = scmp.eq.s32.totalorder %s7, 1
    %p24 = por %p22, %p23
    %p25 = scmp.ne.s32.totalorder %s17, %s20
    %p26 = scmp.eq.s32.totalorder %s7, 0
    %p27 = por %p25, %p26
    %p28 = scmp.ne.s32.totalorder %s17, %s20
    %p29 = scmp.eq.s32.totalorder %s12, 1
    %p30 = por %p28, %p29
    %p31 = scmp.ne.s32.totalorder %s20, %s21
    %p32 = scmp.eq.s32.totalorder %s12, 0
    %p33 = por %p31, %p32
    %p34 = scmp.ne.s32.totalorder %s20, %s21
    %p35 = scmp.eq.s32.totalorder %s13, 1
    %p36 = por %p34, %p35
    %p38 = scmp.ne.s32.totalorder %s21, %s37
    %p39 = scmp.eq.s32.totalorder %s13, 0
    %p40 = por %p38, %p39
    %s41 = ssub.s32 %s7, %s14
    %p42 = scmp.eq.s32.totalorder %s41, 0
    %s44 = sadd.s32 %s43, 1
    %s45 = scalar_select %p42, %s43, %s44
    %p48 = pneg %p42
    %p49 = scmp.eq.s32.totalorder %s7, 1
    %p50 = por %p48, %p49
    %p51 = scmp.ne.s32.totalorder %s43, %s46
    %p52 = scmp.eq.s32.totalorder %s7, 0
    %p53 = por %p51, %p52
    %p54 = scmp.ne.s32.totalorder %s43, %s46
    %p55 = scmp.eq.s32.totalorder %s12, 1
    %p56 = por %p54, %p55
    %p57 = scmp.ne.s32.totalorder %s46, %s47
    %p58 = scmp.eq.s32.totalorder %s12, 0
    %p59 = por %p57, %p58
    %p60 = scmp.ne.s32.totalorder %s46, %s47
    %p61 = scmp.eq.s32.totalorder %s13, 1
    %p62 = por %p60, %p61
    %p64 = scmp.ne.s32.totalorder %s47, %s63
    %p65 = scmp.eq.s32.totalorder %s13, 0
    %p66 = por %p64, %p65
    %p67 = scmp.le.s32.totalorder 1, %s7
    %p68 = scmp.lt.s32.totalorder %s7, 3
    %p69 = pnand %p67, %p68
    %p70 = pneg %p69
    // Predicated region
    $region9: #{tpu_custom_call.1} parent=5 // pred_check
      _
    $region10: #{tpu_custom_call.1} parent=5 // pred_check_branch
      %72 = sbr.rel (%p69) target = $region12
    $region11: #{tpu_custom_call.1} parent=5 // pred_region
      %s73 = ssub.s32 %s7, 1
    $region12: #{tpu_custom_call.1} parent=5 // pred_fallthru
      _
    %p74 = scmp.lt.s32.totalorder %s7, 2
    // Predicated region
    $region13: #{tpu_custom_call.1} parent=5 // pred_check
      %p75 = pneg %p74
    $region14: #{tpu_custom_call.1} parent=5 // pred_check_branch
      %77 = sbr.rel (%p75) target = $region16
    $region15: #{tpu_custom_call.1} parent=5 // pred_region
      // Predicated region
      $region17: #{tpu_custom_call.1} parent=15 // pred_check
        %p78 = pneg %p27
      $region18: #{tpu_custom_call.1} parent=15 // pred_check_branch
        %80 = sbr.rel (%p78) target = $region20
      $region19: #{tpu_custom_call.1} parent=15 // pred_region
        %s81 = smul.u32 8, %s7
        %p82 = scmp.lt.s32.totalorder %s81, 15
        %s83 = scalar_select %p82, %s81, 15
        %s84 = smul.addr %s83, 8
        %s85 = scalar_lea.vmem %s0, %s84
        %s86 = smul.u32 8, %s7
      $region20: #{tpu_custom_call.1} parent=15 // pred_fallthru
        _
    $region16: #{tpu_custom_call.1} parent=5 // pred_fallthru
      _
    %p87 = scmp.le.s32.totalorder 1, %s7
    %p88 = scmp.lt.s32.totalorder %s7, 3
    %p89 = pnand %p87, %p88
    %p90 = pneg %p89
    // Predicated region
    $region21: #{tpu_custom_call.1} parent=5 // pred_check
      _
    $region22: #{tpu_custom_call.1} parent=5 // pred_check_branch
      %92 = sbr.rel (%p89) target = $region24
    $region23: #{tpu_custom_call.1} parent=5 // pred_region
      %s93 = ssub.s32 %s7, 1
      %s94 = smul.u32 8, %s12
      %p95 = scmp.lt.s32.totalorder %s94, 15
      %s96 = scalar_select %p95, %s94, 15
      %s97 = smul.addr %s96, 8
      %s98 = scalar_lea.vmem %s0, %s97
      %p99 = pneg %p33
      %p100 = pneg %p30
      %p101 = pneg %p59
      %p102 = pneg %p56
      %s103 = smul.u32 8, %s12
      %p104 = scmp.lt.s32.totalorder %s103, 15
      %s105 = scalar_select %p104, %s103, 15
      %s106 = smul.addr %s105, 8
      %s107 = scalar_lea.vmem %s1, %s106
      %s108 = smul.u32 8, %s12
      %p109 = scmp.lt.s32.totalorder %s108, 15
      %s110 = scalar_select %p109, %s108, 15
      %s111 = smul.addr %s110, 8
      %s112 = scalar_lea.vmem %s0, %s111
      %s113 = smul.u32 8, %s12
      %s114 = smul.u32 8, %s12
      %p115 = scmp.lt.s32.totalorder %s114, 15
      %s116 = scalar_select %p115, %s114, 15
      %s117 = smul.addr %s116, 8
      %s118 = scalar_lea.vmem %s1, %s117
      %s119 = smul.u32 8, %s12
      %v120 = vld [vmem:[%s112] sm:$0xff]
      %v121 = vld [vmem:[%s112 + $0x8] sm:$0xff]
      %v122 = vld [vmem:[%s112 + $0x10] sm:$0xff]
      %v123 = vld [vmem:[%s112 + $0x18] sm:$0xff]
      %v124 = vld [vmem:[%s112 + $0x20] sm:$0xff]
      %v125 = vld [vmem:[%s112 + $0x28] sm:$0xff]
      %v126 = vld [vmem:[%s112 + $0x30] sm:$0xff]
      %v127 = vld [vmem:[%s112 + $0x38] sm:$0xff]
      %136 = vrot.lane.b32.xlu0 %v120, 1
      %v137 = vpop.permute.xlu0 %136
      %138 = vrot.lane.b32.xlu0 %v121, 1
      %v139 = vpop.permute.xlu0 %138
      %140 = vrot.lane.b32.xlu0 %v122, 1
      %v141 = vpop.permute.xlu0 %140
      %142 = vrot.lane.b32.xlu0 %v123, 1
      %v143 = vpop.permute.xlu0 %142
      %144 = vrot.lane.b32.xlu0 %v124, 1
      %v145 = vpop.permute.xlu0 %144
      %146 = vrot.lane.b32.xlu0 %v125, 1
      %v147 = vpop.permute.xlu0 %146
      %148 = vrot.lane.b32.xlu0 %v126, 1
      %v149 = vpop.permute.xlu0 %148
      %150 = vrot.lane.b32.xlu0 %v127, 1
      %v151 = vpop.permute.xlu0 %150
      %vm160 = vcmask 138248
      %161 = vst.msk [vmem:[%s118] sm:$0xff] %vm160, %v137
      %162 = vst.msk [vmem:[%s118 + $0x8] sm:$0xff] %vm160, %v139
      %163 = vst.msk [vmem:[%s118 + $0x10] sm:$0xff] %vm160, %v141
      %164 = vst.msk [vmem:[%s118 + $0x18] sm:$0xff] %vm160, %v143
      %165 = vst.msk [vmem:[%s118 + $0x20] sm:$0xff] %vm160, %v145
      %166 = vst.msk [vmem:[%s118 + $0x28] sm:$0xff] %vm160, %v147
      %167 = vst.msk [vmem:[%s118 + $0x30] sm:$0xff] %vm160, %v149
      %168 = vst.msk [vmem:[%s118 + $0x38] sm:$0xff] %vm160, %v151
      %169 = vrot.lane.b32.xlu0 %v120, 113
      %v170 = vpop.permute.xlu0 %169
      %171 = vrot.lane.b32.xlu0 %v121, 113
      %v172 = vpop.permute.xlu0 %171
      %173 = vrot.lane.b32.xlu0 %v122, 113
      %v174 = vpop.permute.xlu0 %173
      %175 = vrot.lane.b32.xlu0 %v123, 113
      %v176 = vpop.permute.xlu0 %175
      %177 = vrot.lane.b32.xlu0 %v124, 113
      %v178 = vpop.permute.xlu0 %177
      %179 = vrot.lane.b32.xlu0 %v125, 113
      %v180 = vpop.permute.xlu0 %179
      %181 = vrot.lane.b32.xlu0 %v126, 113
      %v182 = vpop.permute.xlu0 %181
      %183 = vrot.lane.b32.xlu0 %v127, 113
      %v184 = vpop.permute.xlu0 %183
      %vm193 = vcmask 7168
      %194 = vst.msk [vmem:[%s118] sm:$0xff] %vm193, %v170
      %195 = vst.msk [vmem:[%s118 + $0x8] sm:$0xff] %vm193, %v172
      %196 = vst.msk [vmem:[%s118 + $0x10] sm:$0xff] %vm193, %v174
      %197 = vst.msk [vmem:[%s118 + $0x18] sm:$0xff] %vm193, %v176
      %198 = vst.msk [vmem:[%s118 + $0x20] sm:$0xff] %vm193, %v178
      %199 = vst.msk [vmem:[%s118 + $0x28] sm:$0xff] %vm193, %v180
      %200 = vst.msk [vmem:[%s118 + $0x30] sm:$0xff] %vm193, %v182
      %201 = vst.msk [vmem:[%s118 + $0x38] sm:$0xff] %vm193, %v184
      %202 = vrot.lane.b32.xlu0 %v120, 17
      %v203 = vpop.permute.xlu0 %202
      %204 = vrot.lane.b32.xlu0 %v121, 17
      %v205 = vpop.permute.xlu0 %204
      %206 = vrot.lane.b32.xlu0 %v122, 17
      %v207 = vpop.permute.xlu0 %206
      %208 = vrot.lane.b32.xlu0 %v123, 17
      %v209 = vpop.permute.xlu0 %208
      %210 = vrot.lane.b32.xlu0 %v124, 17
      %v211 = vpop.permute.xlu0 %210
      %212 = vrot.lane.b32.xlu0 %v125, 17
      %v213 = vpop.permute.xlu0 %212
      %214 = vrot.lane.b32.xlu0 %v126, 17
      %v215 = vpop.permute.xlu0 %214
      %216 = vrot.lane.b32.xlu0 %v127, 17
      %v217 = vpop.permute.xlu0 %216
      %vm226 = vcmask 146568
      %227 = vst.msk [vmem:[%s118] sm:$0xff] %vm226, %v203
      %228 = vst.msk [vmem:[%s118 + $0x8] sm:$0xff] %vm226, %v205
      %229 = vst.msk [vmem:[%s118 + $0x10] sm:$0xff] %vm226, %v207
      %230 = vst.msk [vmem:[%s118 + $0x18] sm:$0xff] %vm226, %v209
      %231 = vst.msk [vmem:[%s118 + $0x20] sm:$0xff] %vm226, %v211
      %232 = vst.msk [vmem:[%s118 + $0x28] sm:$0xff] %vm226, %v213
      %233 = vst.msk [vmem:[%s118 + $0x30] sm:$0xff] %vm226, %v215
      %234 = vst.msk [vmem:[%s118 + $0x38] sm:$0xff] %vm226, %v217
      %s235 = smul.u32 8, %s12
      %p236 = scmp.lt.s32.totalorder %s235, 15
      %s237 = scalar_select %p236, %s235, 15
      %s238 = smul.addr %s237, 8
      %s239 = scalar_lea.vmem %s1, %s238
      // Predicated region
      $region25: #{tpu_custom_call.1} parent=23 // pred_check
        %p240 = pneg %p56
      $region26: #{tpu_custom_call.1} parent=23 // pred_check_branch
        %242 = sbr.rel (%p240) target = $region28
      $region27: #{tpu_custom_call.1} parent=23 // pred_region
        %s243 = smul.u32 8, %s12
      $region28: #{tpu_custom_call.1} parent=23 // pred_fallthru
        _
    $region24: #{tpu_custom_call.1} parent=5 // pred_fallthru
      _
    %p244 = scmp.le.s32.totalorder 2, %s7
    // Predicated region
    $region29: #{tpu_custom_call.1} parent=5 // pred_check
      %p245 = pneg %p244
    $region30: #{tpu_custom_call.1} parent=5 // pred_check_branch
      %247 = sbr.rel (%p245) target = $region32
    $region31: #{tpu_custom_call.1} parent=5 // pred_region
      %s248 = ssub.s32 %s7, 2
      // Predicated region
      $region33: #{tpu_custom_call.1} parent=31 // pred_check
        %p249 = pneg %p62
      $region34: #{tpu_custom_call.1} parent=31 // pred_check_branch
        %251 = sbr.rel (%p249) target = $region36
      $region35: #{tpu_custom_call.1} parent=31 // pred_region
        %s252 = smul.u32 8, %s13
        %p253 = scmp.lt.s32.totalorder %s252, 15
        %s254 = scalar_select %p253, %s252, 15
        %s255 = smul.addr %s254, 8
        %s256 = scalar_lea.vmem %s1, %s255
      $region36: #{tpu_custom_call.1} parent=31 // pred_fallthru
        _
    $region32: #{tpu_custom_call.1} parent=5 // pred_fallthru
      _
  $region6: #{tpu_custom_call.1} parent=0 // loop_footer
    %s11 = sadd.s32 1, %s7
  $region7: #{tpu_custom_call.1} parent=0 // loop_footer_branch
    %6 = sbr.rel target = $region3
  $region8: #{tpu_custom_call.1} parent=0 // loop_exit
    _

</llo_original>
